<compile_context>
chip_gen: v7x
topology: tpu7x:2x2x1
jax: 0.10.0
libtpu: 0.0.40
codegen_flags: <defaults>
</compile_context>

<pallas_src>
import functools

import jax
import jax.numpy as jnp
import numpy as np
from jax import lax
from jax.experimental import pallas as pl
from jax.experimental.pallas import tpu as pltpu

_OUT_C = 4
_TAPS = tuple((dh, dw) for dh in (-1, 0, 1) for dw in (-1, 0, 1))


# --------------------------------------------------------------------------
# Kernel
# --------------------------------------------------------------------------
def _attention_kernel(x_ref, masks_ref, w1_ref, b1_ref, w2_ref, b2_ref,
                      w3_ref, b3_ref, o_ref, *, H, W):
    """One grid step: NB sublane-packed image groups, spatial on lanes."""
    NB, _, HWp = x_ref.shape
    masks = masks_ref[...]                         # (9, HWp) border masks, f32

    def conv3x3(x, w_ref, b_ref):
        # x: (C_in, HWp) ; w_ref: (9*C_out, C_in) tap-major block rows.
        # All 9 taps fused into ONE MXU matmul (taps stacked on M); each tap's
        # rows are then lane-rotated into place (XLU roll), masked (VPU) and
        # accumulated.  Everything stays tile-aligned.
        cout = w_ref.shape[0] // 9
        y = jnp.dot(w_ref[...], x, preferred_element_type=jnp.float32)
        acc = jnp.zeros((cout, HWp), jnp.float32)
        for t, (dh, dw) in enumerate(_TAPS):
            d = dh * W + dw
            yt = y[t * cout:(t + 1) * cout, :]
            if d == 0:
                acc = acc + yt                     # centre tap always in-bounds
            else:
                # XLU lane rotation; the precomputed mask zeroes every lane
                # whose rotated source crossed a row / the image edge / the
                # 128-alignment pad tail, so wrap-around never leaks.
                yt = pltpu.roll(yt, shift=(-d) % HWp, axis=1)
                acc = acc + yt * masks[t:t + 1, :]
        return acc + b_ref[...]

    for b in range(NB):                            # small static count: unrolled
        x = x_ref[b].astype(jnp.float32)           # (P*Cin, HWp)
        a1 = jnp.maximum(conv3x3(x, w1_ref, b1_ref), 0.0)
        a2 = jnp.maximum(conv3x3(a1, w2_ref, b2_ref), 0.0)
        out = jnp.dot(w3_ref[...], a2,
                      preferred_element_type=jnp.float32) + b3_ref[...]
        o_ref[b] = jax.nn.sigmoid(out).astype(o_ref.dtype)   # lane-dense store


# --------------------------------------------------------------------------
# Host-side helpers
# --------------------------------------------------------------------------
def _tpu_vmem_bytes():
    try:
        return int(pltpu.get_tpu_info().vmem_capacity_bytes)
    except Exception:
        return 64 << 20        # conservative: v7x per-TensorCore VMEM


def _build_masks(H, W, HWp):
    """(9, HWp) f32 border-validity masks for the 3x3 taps (precomputed)."""
    pos = np.arange(HWp)
    hh, ww = pos // W, pos % W
    rows = []
    for dh, dw in _TAPS:
        valid = ((hh + dh >= 0) & (hh + dh < H) &
                 (ww + dw >= 0) & (ww + dw < W) & (pos < H * W))
        rows.append(valid.astype(np.float32))
    return jnp.asarray(np.stack(rows, axis=0))


def _prep_params(params, P):
    """HWIO conv params -> tap-major, P-block-diagonal kernel layout."""
    w1, b1, w2, b2, w3, b3 = params
    cin, cmid = w1.shape[2], w1.shape[3]
    eye = jnp.eye(P, dtype=jnp.float32)

    def fuse3x3(w):                      # (3,3,Ci,Co) -> (9*P*Co, P*Ci)
        ci, co = w.shape[2], w.shape[3]
        wt = jnp.transpose(w.reshape(9, ci, co), (0, 2, 1))   # (9, Co, Ci)
        return jnp.concatenate([jnp.kron(eye, wt[t]) for t in range(9)], axis=0)

    w1k = fuse3x3(w1)                                         # (9*P*Cmid, P*Cin)
    w2k = fuse3x3(w2)                                         # (9*P*Cmid, P*Cmid)
    w3k = jnp.kron(eye, jnp.transpose(w3.reshape(cmid, _OUT_C), (1, 0)))
    b1k = jnp.tile(b1, P).reshape(P * cmid, 1)
    b2k = jnp.tile(b2, P).reshape(P * cmid, 1)
    b3k = jnp.tile(b3, P).reshape(P * _OUT_C, 1)
    return w1k, b1k, w2k, b2k, w3k, b3k


def _choose_layout(N, Cin, Cmid, HWp):
    """Pick (P sublane-pack factor, NB packed groups per grid step).

    Priorities: (1) keep >= 2 grid steps when N >= 2 (v7x dual-TC sharding and
    DMA/compute overlap of the software pipeline); (2) pack sublanes densely;
    (3) grow the per-step block until its HBM traffic amortizes the ~0.35us
    per-step overhead, within a per-generation VMEM budget.
    """
    phys = _tpu_vmem_bytes()
    budget = min(phys // 4, 32 << 20)

    def step_vmem(nb, p):
        # double-buffered in/out blocks + live per-group intermediates + masks.
        rows = nb * p * (2 * (Cin + _OUT_C) + Cin + 20 * Cmid + _OUT_C) + 16
        return rows * HWp * 4

    P = 1
    for d in range(2, N + 1):
        if N % d or d > 8 or d * Cin > 32:
            continue
        if N // d < 2:                      # keep >= 2 grid steps
            continue
        if step_vmem(1, d) > budget:
            continue
        P = d
    groups = N // P

    NB = 1
    io_per_group = P * (Cin + _OUT_C) * HWp * 4
    for d in range(1, groups + 1):
        if groups % d:
            continue
        if step_vmem(d, P) > budget:
            break
        if groups // d < 2 and groups >= 2:
            break
        NB = d
        if d * io_per_group >= (256 << 10):
            break
    return P, NB, step_vmem(NB, P)


# --------------------------------------------------------------------------
# Wrapper
# --------------------------------------------------------------------------
def attention_forward(x_nchw, params):
    """x_nchw: (N, Cin, H, W) float32. Returns (N, 4, H, W)."""
    N, Cin, H, W = x_nchw.shape
    Cmid = Cin // 2
    HW = H * W
    HWp = ((HW + 127) // 128) * 128          # lane-dense (128-aligned) spatial axis

    P, NB, step_bytes = _choose_layout(N, Cin, Cmid, HWp)
    groups = N // P
    steps = groups // NB

    w1k, b1k, w2k, b2k, w3k, b3k = _prep_params(params, P)
    masks = _build_masks(H, W, HWp)

    x_flat = x_nchw.reshape(N, Cin, HW)      # free reshape (already NCHW-flat)
    if HWp != HW:
        x_flat = jnp.pad(x_flat, ((0, 0), (0, 0), (0, HWp - HW)))
    x_packed = x_flat.reshape(groups, P * Cin, HWp)   # free: packs P images/sublanes

    CinP, CmidP, CoutP = P * Cin, P * Cmid, P * _OUT_C
    kernel = functools.partial(_attention_kernel, H=H, W=W)

    cost = pl.CostEstimate(
        flops=2 * N * HW * (9 * Cin * Cmid + 9 * Cmid * Cmid + Cmid * _OUT_C),
        transcendentals=N * HW * _OUT_C,
        bytes_accessed=N * HW * (Cin + _OUT_C) * 4)

    phys = _tpu_vmem_bytes()
    vmem_limit = int(min(phys * 3 // 4, max(32 << 20, 2 * step_bytes)))

    out_packed = pl.pallas_call(
        kernel,
        out_shape=jax.ShapeDtypeStruct((groups, CoutP, HWp), jnp.float32),
        grid_spec=pltpu.PrefetchScalarGridSpec(
            num_scalar_prefetch=0,
            grid=(steps,),
            in_specs=[
                pl.BlockSpec((NB, CinP, HWp), lambda i: (i, 0, 0)),
                pl.BlockSpec((9, HWp), lambda i: (0, 0)),
                pl.BlockSpec((9 * CmidP, CinP), lambda i: (0, 0)),
                pl.BlockSpec((CmidP, 1), lambda i: (0, 0)),
                pl.BlockSpec((9 * CmidP, CmidP), lambda i: (0, 0)),
                pl.BlockSpec((CmidP, 1), lambda i: (0, 0)),
                pl.BlockSpec((CoutP, CmidP), lambda i: (0, 0)),
                pl.BlockSpec((CoutP, 1), lambda i: (0, 0)),
            ],
            out_specs=pl.BlockSpec((NB, CoutP, HWp), lambda i: (i, 0, 0)),
        ),
        compiler_params=pltpu.CompilerParams(
            dimension_semantics=("parallel",),
            vmem_limit_bytes=vmem_limit),
        cost_estimate=cost,
    )(x_packed, masks, w1k, b1k, w2k, b2k, w3k, b3k)

    out = out_packed.reshape(N, _OUT_C, HWp)          # free: unpack sublane batch
    if HWp != HW:
        out = out[:, :, :HW]
    return out.reshape(N, _OUT_C, H, W)


# --------------------------------------------------------------------------
# Parameters and pure-JAX reference
# --------------------------------------------------------------------------
def init_params(key, in_channels):
    """Deterministic parameters matching the PyTorch module's shapes (HWIO)."""
    cmid = in_channels // 2
    k1, k2, k3 = jax.random.split(key, 3)
    w1 = jax.random.normal(k1, (3, 3, in_channels, cmid), jnp.float32) * 0.1
    b1 = jnp.linspace(-0.1, 0.1, cmid, dtype=jnp.float32)
    w2 = jax.random.normal(k2, (3, 3, cmid, cmid), jnp.float32) * 0.1
    b2 = jnp.linspace(0.05, -0.05, cmid, dtype=jnp.float32)
    w3 = jax.random.normal(k3, (1, 1, cmid, _OUT_C), jnp.float32) * 0.1
    b3 = jnp.linspace(-0.2, 0.2, _OUT_C, dtype=jnp.float32)
    return w1, b1, w2, b2, w3, b3


def reference_forward(x_nchw, params):
    """Pure-JAX reference using lax.conv_general_dilated (NHWC/HWIO)."""
    w1, b1, w2, b2, w3, b3 = params
    x = jnp.transpose(x_nchw, (0, 2, 3, 1))
    dn = ("NHWC", "HWIO", "NHWC")
    y = lax.conv_general_dilated(x, w1, (1, 1), "SAME", dimension_numbers=dn) + b1
    y = jnp.maximum(y, 0.0)
    y = lax.conv_general_dilated(y, w2, (1, 1), "SAME", dimension_numbers=dn) + b2
    y = jnp.maximum(y, 0.0)
    y = lax.conv_general_dilated(y, w3, (1, 1), "SAME", dimension_numbers=dn) + b3
    y = jax.nn.sigmoid(y)
    return jnp.transpose(y, (0, 3, 1, 2))


if __name__ == "__main__":
    key = jax.random.PRNGKey(0)
    configs = [
        (2, 4, 16, 16),   # canonical small test shape
        (4, 4, 16, 16),   # exercises P=2 sublane batch packing (block-diag weights)
        (2, 4, 12, 12),   # exercises lane padding (H*W not a multiple of 128)
    ]
    for idx, (N, Cin, H, W) in enumerate(configs):
        kx, kp = jax.random.split(jax.random.fold_in(key, idx))
        x = jax.random.normal(kx, (N, Cin, H, W), jnp.float32)
        params = init_params(kp, Cin)

        out = jax.block_until_ready(attention_forward(x, params))
        ref = jax.block_until_ready(reference_forward(x, params))

        np.testing.assert_allclose(np.asarray(out), np.asarray(ref),
                                   rtol=1e-5, atol=1e-5)
        assert out.shape == (N, _OUT_C, H, W)
    print("KERNEL_OK")
</pallas_src>

<mosaic_0001>
module attributes {stable_mosaic.version = 11 : i64} {
  func.func @_attention_kernel(%arg0: i32, %arg1: memref<1x4x256xf32, #tpu.memory_space<vmem>>, %arg2: memref<9x256xf32, #tpu.memory_space<vmem>>, %arg3: memref<18x4xf32, #tpu.memory_space<vmem>>, %arg4: memref<2x1xf32, #tpu.memory_space<vmem>>, %arg5: memref<18x2xf32, #tpu.memory_space<vmem>>, %arg6: memref<2x1xf32, #tpu.memory_space<vmem>>, %arg7: memref<4x2xf32, #tpu.memory_space<vmem>>, %arg8: memref<4x1xf32, #tpu.memory_space<vmem>>, %arg9: memref<1x4x256xf32, #tpu.memory_space<vmem>>) attributes {dimension_semantics = [#tpu.dimension_semantics<parallel>], iteration_bounds = array<i64: 2>, scalar_prefetch = 0 : i64, scratch_operands = 0 : i64, tpu.core_type = #tpu.core_type<tc>, window_params = [{transform_indices = @transform_0, window_bounds = array<i64: 1, 4, 256>}, {pipeline_mode = #tpu.pipeline_mode<synchronous>, transform_indices = @transform_1, window_bounds = array<i64: 9, 256>}, {pipeline_mode = #tpu.pipeline_mode<synchronous>, transform_indices = @transform_2, window_bounds = array<i64: 18, 4>}, {pipeline_mode = #tpu.pipeline_mode<synchronous>, transform_indices = @transform_3, window_bounds = array<i64: 2, 1>}, {pipeline_mode = #tpu.pipeline_mode<synchronous>, transform_indices = @transform_4, window_bounds = array<i64: 18, 2>}, {pipeline_mode = #tpu.pipeline_mode<synchronous>, transform_indices = @transform_5, window_bounds = array<i64: 2, 1>}, {pipeline_mode = #tpu.pipeline_mode<synchronous>, transform_indices = @transform_6, window_bounds = array<i64: 4, 2>}, {pipeline_mode = #tpu.pipeline_mode<synchronous>, transform_indices = @transform_7, window_bounds = array<i64: 4, 1>}, {transform_indices = @transform_8, window_bounds = array<i64: 1, 4, 256>}]} {
    %c0 = arith.constant 0 : index
    %c0_0 = arith.constant 0 : index
    %0 = vector.load %arg2[%c0, %c0_0] : memref<9x256xf32, #tpu.memory_space<vmem>>, vector<9x256xf32>
    %c0_1 = arith.constant 0 : index
    %c0_2 = arith.constant 0 : index
    %c0_3 = arith.constant 0 : index
    %1 = vector.load %arg1[%c0_1, %c0_2, %c0_3] : memref<1x4x256xf32, #tpu.memory_space<vmem>>, vector<1x4x256xf32>
    %2 = vector.shape_cast %1 : vector<1x4x256xf32> to vector<4x256xf32>
    %c0_4 = arith.constant 0 : index
    %c0_5 = arith.constant 0 : index
    %3 = vector.load %arg3[%c0_4, %c0_5] : memref<18x4xf32, #tpu.memory_space<vmem>>, vector<18x4xf32>
    %cst = arith.constant dense<0.000000e+00> : vector<18x256xf32>
    %4 = tpu.matmul %3, %2, %cst {dimension_numbers = #tpu.dot_dimension_numbers<[1], [0], [0], [1], [0, 0, 1, 1], [], []>} : vector<18x4xf32>, vector<4x256xf32>, vector<18x256xf32> -> vector<18x256xf32>
    %cst_6 = arith.constant 0.000000e+00 : f32
    %5 = vector.broadcast %cst_6 : f32 to vector<2x256xf32>
    %6 = vector.extract_strided_slice %4 {offsets = [0, 0], sizes = [2, 256], strides = [1, 1]} : vector<18x256xf32> to vector<2x256xf32>
    %c17_i32 = arith.constant 17 : i32
    %7 = tpu.dynamic_rotate %6 by %c17_i32 dim 1 : vector<2x256xf32>, i32 -> vector<2x256xf32>
    %8 = vector.extract_strided_slice %0 {offsets = [0, 0], sizes = [1, 256], strides = [1, 1]} : vector<9x256xf32> to vector<1x256xf32>
    %9 = vector.broadcast %8 : vector<1x256xf32> to vector<2x256xf32>
    %10 = arith.mulf %7, %9 : vector<2x256xf32>
    %11 = arith.addf %5, %10 : vector<2x256xf32>
    %12 = vector.extract_strided_slice %4 {offsets = [2, 0], sizes = [2, 256], strides = [1, 1]} : vector<18x256xf32> to vector<2x256xf32>
    %c16_i32 = arith.constant 16 : i32
    %13 = tpu.dynamic_rotate %12 by %c16_i32 dim 1 : vector<2x256xf32>, i32 -> vector<2x256xf32>
    %14 = vector.extract_strided_slice %0 {offsets = [1, 0], sizes = [1, 256], strides = [1, 1]} : vector<9x256xf32> to vector<1x256xf32>
    %15 = vector.broadcast %14 : vector<1x256xf32> to vector<2x256xf32>
    %16 = arith.mulf %13, %15 : vector<2x256xf32>
    %17 = arith.addf %11, %16 : vector<2x256xf32>
    %18 = vector.extract_strided_slice %4 {offsets = [4, 0], sizes = [2, 256], strides = [1, 1]} : vector<18x256xf32> to vector<2x256xf32>
    %c15_i32 = arith.constant 15 : i32
    %19 = tpu.dynamic_rotate %18 by %c15_i32 dim 1 : vector<2x256xf32>, i32 -> vector<2x256xf32>
    %20 = vector.extract_strided_slice %0 {offsets = [2, 0], sizes = [1, 256], strides = [1, 1]} : vector<9x256xf32> to vector<1x256xf32>
    %21 = vector.broadcast %20 : vector<1x256xf32> to vector<2x256xf32>
    %22 = arith.mulf %19, %21 : vector<2x256xf32>
    %23 = arith.addf %17, %22 : vector<2x256xf32>
    %24 = vector.extract_strided_slice %4 {offsets = [6, 0], sizes = [2, 256], strides = [1, 1]} : vector<18x256xf32> to vector<2x256xf32>
    %c1_i32 = arith.constant 1 : i32
    %25 = tpu.dynamic_rotate %24 by %c1_i32 dim 1 : vector<2x256xf32>, i32 -> vector<2x256xf32>
    %26 = vector.extract_strided_slice %0 {offsets = [3, 0], sizes = [1, 256], strides = [1, 1]} : vector<9x256xf32> to vector<1x256xf32>
    %27 = vector.broadcast %26 : vector<1x256xf32> to vector<2x256xf32>
    %28 = arith.mulf %25, %27 : vector<2x256xf32>
    %29 = arith.addf %23, %28 : vector<2x256xf32>
    %30 = vector.extract_strided_slice %4 {offsets = [8, 0], sizes = [2, 256], strides = [1, 1]} : vector<18x256xf32> to vector<2x256xf32>
    %31 = arith.addf %29, %30 : vector<2x256xf32>
    %32 = vector.extract_strided_slice %4 {offsets = [10, 0], sizes = [2, 256], strides = [1, 1]} : vector<18x256xf32> to vector<2x256xf32>
    %c255_i32 = arith.constant 255 : i32
    %33 = tpu.dynamic_rotate %32 by %c255_i32 dim 1 : vector<2x256xf32>, i32 -> vector<2x256xf32>
    %34 = vector.extract_strided_slice %0 {offsets = [5, 0], sizes = [1, 256], strides = [1, 1]} : vector<9x256xf32> to vector<1x256xf32>
    %35 = vector.broadcast %34 : vector<1x256xf32> to vector<2x256xf32>
    %36 = arith.mulf %33, %35 : vector<2x256xf32>
    %37 = arith.addf %31, %36 : vector<2x256xf32>
    %38 = vector.extract_strided_slice %4 {offsets = [12, 0], sizes = [2, 256], strides = [1, 1]} : vector<18x256xf32> to vector<2x256xf32>
    %c241_i32 = arith.constant 241 : i32
    %39 = tpu.dynamic_rotate %38 by %c241_i32 dim 1 : vector<2x256xf32>, i32 -> vector<2x256xf32>
    %40 = vector.extract_strided_slice %0 {offsets = [6, 0], sizes = [1, 256], strides = [1, 1]} : vector<9x256xf32> to vector<1x256xf32>
    %41 = vector.broadcast %40 : vector<1x256xf32> to vector<2x256xf32>
    %42 = arith.mulf %39, %41 : vector<2x256xf32>
    %43 = arith.addf %37, %42 : vector<2x256xf32>
    %44 = vector.extract_strided_slice %4 {offsets = [14, 0], sizes = [2, 256], strides = [1, 1]} : vector<18x256xf32> to vector<2x256xf32>
    %c240_i32 = arith.constant 240 : i32
    %45 = tpu.dynamic_rotate %44 by %c240_i32 dim 1 : vector<2x256xf32>, i32 -> vector<2x256xf32>
    %46 = vector.extract_strided_slice %0 {offsets = [7, 0], sizes = [1, 256], strides = [1, 1]} : vector<9x256xf32> to vector<1x256xf32>
    %47 = vector.broadcast %46 : vector<1x256xf32> to vector<2x256xf32>
    %48 = arith.mulf %45, %47 : vector<2x256xf32>
    %49 = arith.addf %43, %48 : vector<2x256xf32>
    %50 = vector.extract_strided_slice %4 {offsets = [16, 0], sizes = [2, 256], strides = [1, 1]} : vector<18x256xf32> to vector<2x256xf32>
    %c239_i32 = arith.constant 239 : i32
    %51 = tpu.dynamic_rotate %50 by %c239_i32 dim 1 : vector<2x256xf32>, i32 -> vector<2x256xf32>
    %52 = vector.extract_strided_slice %0 {offsets = [8, 0], sizes = [1, 256], strides = [1, 1]} : vector<9x256xf32> to vector<1x256xf32>
    %53 = vector.broadcast %52 : vector<1x256xf32> to vector<2x256xf32>
    %54 = arith.mulf %51, %53 : vector<2x256xf32>
    %55 = arith.addf %49, %54 : vector<2x256xf32>
    %c0_7 = arith.constant 0 : index
    %c0_8 = arith.constant 0 : index
    %56 = vector.load %arg4[%c0_7, %c0_8] : memref<2x1xf32, #tpu.memory_space<vmem>>, vector<2x1xf32>
    %57 = vector.broadcast %56 : vector<2x1xf32> to vector<2x256xf32>
    %58 = arith.addf %55, %57 : vector<2x256xf32>
    %cst_9 = arith.constant 0.000000e+00 : f32
    %59 = vector.broadcast %cst_9 : f32 to vector<2x256xf32>
    %60 = arith.maximumf %58, %59 : vector<2x256xf32>
    %c0_10 = arith.constant 0 : index
    %c0_11 = arith.constant 0 : index
    %61 = vector.load %arg5[%c0_10, %c0_11] : memref<18x2xf32, #tpu.memory_space<vmem>>, vector<18x2xf32>
    %cst_12 = arith.constant dense<0.000000e+00> : vector<18x256xf32>
    %62 = tpu.matmul %61, %60, %cst_12 {dimension_numbers = #tpu.dot_dimension_numbers<[1], [0], [0], [1], [0, 0, 1, 1], [], []>} : vector<18x2xf32>, vector<2x256xf32>, vector<18x256xf32> -> vector<18x256xf32>
    %cst_13 = arith.constant 0.000000e+00 : f32
    %63 = vector.broadcast %cst_13 : f32 to vector<2x256xf32>
    %64 = vector.extract_strided_slice %62 {offsets = [0, 0], sizes = [2, 256], strides = [1, 1]} : vector<18x256xf32> to vector<2x256xf32>
    %c17_i32_14 = arith.constant 17 : i32
    %65 = tpu.dynamic_rotate %64 by %c17_i32_14 dim 1 : vector<2x256xf32>, i32 -> vector<2x256xf32>
    %66 = vector.extract_strided_slice %0 {offsets = [0, 0], sizes = [1, 256], strides = [1, 1]} : vector<9x256xf32> to vector<1x256xf32>
    %67 = vector.broadcast %66 : vector<1x256xf32> to vector<2x256xf32>
    %68 = arith.mulf %65, %67 : vector<2x256xf32>
    %69 = arith.addf %63, %68 : vector<2x256xf32>
    %70 = vector.extract_strided_slice %62 {offsets = [2, 0], sizes = [2, 256], strides = [1, 1]} : vector<18x256xf32> to vector<2x256xf32>
    %c16_i32_15 = arith.constant 16 : i32
    %71 = tpu.dynamic_rotate %70 by %c16_i32_15 dim 1 : vector<2x256xf32>, i32 -> vector<2x256xf32>
    %72 = vector.extract_strided_slice %0 {offsets = [1, 0], sizes = [1, 256], strides = [1, 1]} : vector<9x256xf32> to vector<1x256xf32>
    %73 = vector.broadcast %72 : vector<1x256xf32> to vector<2x256xf32>
    %74 = arith.mulf %71, %73 : vector<2x256xf32>
    %75 = arith.addf %69, %74 : vector<2x256xf32>
    %76 = vector.extract_strided_slice %62 {offsets = [4, 0], sizes = [2, 256], strides = [1, 1]} : vector<18x256xf32> to vector<2x256xf32>
    %c15_i32_16 = arith.constant 15 : i32
    %77 = tpu.dynamic_rotate %76 by %c15_i32_16 dim 1 : vector<2x256xf32>, i32 -> vector<2x256xf32>
    %78 = vector.extract_strided_slice %0 {offsets = [2, 0], sizes = [1, 256], strides = [1, 1]} : vector<9x256xf32> to vector<1x256xf32>
    %79 = vector.broadcast %78 : vector<1x256xf32> to vector<2x256xf32>
    %80 = arith.mulf %77, %79 : vector<2x256xf32>
    %81 = arith.addf %75, %80 : vector<2x256xf32>
    %82 = vector.extract_strided_slice %62 {offsets = [6, 0], sizes = [2, 256], strides = [1, 1]} : vector<18x256xf32> to vector<2x256xf32>
    %c1_i32_17 = arith.constant 1 : i32
    %83 = tpu.dynamic_rotate %82 by %c1_i32_17 dim 1 : vector<2x256xf32>, i32 -> vector<2x256xf32>
    %84 = vector.extract_strided_slice %0 {offsets = [3, 0], sizes = [1, 256], strides = [1, 1]} : vector<9x256xf32> to vector<1x256xf32>
    %85 = vector.broadcast %84 : vector<1x256xf32> to vector<2x256xf32>
    %86 = arith.mulf %83, %85 : vector<2x256xf32>
    %87 = arith.addf %81, %86 : vector<2x256xf32>
    %88 = vector.extract_strided_slice %62 {offsets = [8, 0], sizes = [2, 256], strides = [1, 1]} : vector<18x256xf32> to vector<2x256xf32>
    %89 = arith.addf %87, %88 : vector<2x256xf32>
    %90 = vector.extract_strided_slice %62 {offsets = [10, 0], sizes = [2, 256], strides = [1, 1]} : vector<18x256xf32> to vector<2x256xf32>
    %c255_i32_18 = arith.constant 255 : i32
    %91 = tpu.dynamic_rotate %90 by %c255_i32_18 dim 1 : vector<2x256xf32>, i32 -> vector<2x256xf32>
    %92 = vector.extract_strided_slice %0 {offsets = [5, 0], sizes = [1, 256], strides = [1, 1]} : vector<9x256xf32> to vector<1x256xf32>
    %93 = vector.broadcast %92 : vector<1x256xf32> to vector<2x256xf32>
    %94 = arith.mulf %91, %93 : vector<2x256xf32>
    %95 = arith.addf %89, %94 : vector<2x256xf32>
    %96 = vector.extract_strided_slice %62 {offsets = [12, 0], sizes = [2, 256], strides = [1, 1]} : vector<18x256xf32> to vector<2x256xf32>
    %c241_i32_19 = arith.constant 241 : i32
    %97 = tpu.dynamic_rotate %96 by %c241_i32_19 dim 1 : vector<2x256xf32>, i32 -> vector<2x256xf32>
    %98 = vector.extract_strided_slice %0 {offsets = [6, 0], sizes = [1, 256], strides = [1, 1]} : vector<9x256xf32> to vector<1x256xf32>
    %99 = vector.broadcast %98 : vector<1x256xf32> to vector<2x256xf32>
    %100 = arith.mulf %97, %99 : vector<2x256xf32>
    %101 = arith.addf %95, %100 : vector<2x256xf32>
    %102 = vector.extract_strided_slice %62 {offsets = [14, 0], sizes = [2, 256], strides = [1, 1]} : vector<18x256xf32> to vector<2x256xf32>
    %c240_i32_20 = arith.constant 240 : i32
    %103 = tpu.dynamic_rotate %102 by %c240_i32_20 dim 1 : vector<2x256xf32>, i32 -> vector<2x256xf32>
    %104 = vector.extract_strided_slice %0 {offsets = [7, 0], sizes = [1, 256], strides = [1, 1]} : vector<9x256xf32> to vector<1x256xf32>
    %105 = vector.broadcast %104 : vector<1x256xf32> to vector<2x256xf32>
    %106 = arith.mulf %103, %105 : vector<2x256xf32>
    %107 = arith.addf %101, %106 : vector<2x256xf32>
    %108 = vector.extract_strided_slice %62 {offsets = [16, 0], sizes = [2, 256], strides = [1, 1]} : vector<18x256xf32> to vector<2x256xf32>
    %c239_i32_21 = arith.constant 239 : i32
    %109 = tpu.dynamic_rotate %108 by %c239_i32_21 dim 1 : vector<2x256xf32>, i32 -> vector<2x256xf32>
    %110 = vector.extract_strided_slice %0 {offsets = [8, 0], sizes = [1, 256], strides = [1, 1]} : vector<9x256xf32> to vector<1x256xf32>
    %111 = vector.broadcast %110 : vector<1x256xf32> to vector<2x256xf32>
    %112 = arith.mulf %109, %111 : vector<2x256xf32>
    %113 = arith.addf %107, %112 : vector<2x256xf32>
    %c0_22 = arith.constant 0 : index
    %c0_23 = arith.constant 0 : index
    %114 = vector.load %arg6[%c0_22, %c0_23] : memref<2x1xf32, #tpu.memory_space<vmem>>, vector<2x1xf32>
    %115 = vector.broadcast %114 : vector<2x1xf32> to vector<2x256xf32>
    %116 = arith.addf %113, %115 : vector<2x256xf32>
    %cst_24 = arith.constant 0.000000e+00 : f32
    %117 = vector.broadcast %cst_24 : f32 to vector<2x256xf32>
    %118 = arith.maximumf %116, %117 : vector<2x256xf32>
    %c0_25 = arith.constant 0 : index
    %c0_26 = arith.constant 0 : index
    %119 = vector.load %arg7[%c0_25, %c0_26] : memref<4x2xf32, #tpu.memory_space<vmem>>, vector<4x2xf32>
    %cst_27 = arith.constant dense<0.000000e+00> : vector<4x256xf32>
    %120 = tpu.matmul %119, %118, %cst_27 {dimension_numbers = #tpu.dot_dimension_numbers<[1], [0], [0], [1], [0, 0, 1, 1], [], []>} : vector<4x2xf32>, vector<2x256xf32>, vector<4x256xf32> -> vector<4x256xf32>
    %c0_28 = arith.constant 0 : index
    %c0_29 = arith.constant 0 : index
    %121 = vector.load %arg8[%c0_28, %c0_29] : memref<4x1xf32, #tpu.memory_space<vmem>>, vector<4x1xf32>
    %122 = vector.broadcast %121 : vector<4x1xf32> to vector<4x256xf32>
    %123 = arith.addf %120, %122 : vector<4x256xf32>
    %124 = arith.negf %123 : vector<4x256xf32>
    %125 = math.exp %124 : vector<4x256xf32>
    %cst_30 = arith.constant 1.000000e+00 : f32
    %126 = vector.broadcast %cst_30 : f32 to vector<4x256xf32>
    %127 = arith.addf %126, %125 : vector<4x256xf32>
    %128 = arith.divf %126, %127 : vector<4x256xf32>
    %c0_31 = arith.constant 0 : index
    %c0_32 = arith.constant 0 : index
    %c0_33 = arith.constant 0 : index
    %129 = vector.load %arg9[%c0_31, %c0_32, %c0_33] : memref<1x4x256xf32, #tpu.memory_space<vmem>>, vector<1x4x256xf32>
    %130 = vector.shape_cast %129 : vector<1x4x256xf32> to vector<4x256xf32>
    %131 = vector.shape_cast %128 : vector<4x256xf32> to vector<1x4x256xf32>
    tpu.vector_store %arg9[%c0_31, %c0_32, %c0_33], %131 {strides = array<i32>} : memref<1x4x256xf32, #tpu.memory_space<vmem>>, vector<1x4x256xf32>,
    return
  }
  func.func @transform_0(%arg0: i32) -> (i32, i32, i32) {
    %c0_i32 = arith.constant 0 : i32
    %c0_i32_0 = arith.constant 0 : i32
    %c0_i32_1 = arith.constant 0 : i32
    return %arg0, %c0_i32, %c0_i32_0 : i32, i32, i32
  }
  func.func @transform_1(%arg0: i32) -> (i32, i32) {
    %c0_i32 = arith.constant 0 : i32
    %c0_i32_0 = arith.constant 0 : i32
    %c0_i32_1 = arith.constant 0 : i32
    return %c0_i32, %c0_i32_0 : i32, i32
  }
  func.func @transform_2(%arg0: i32) -> (i32, i32) {
    %c0_i32 = arith.constant 0 : i32
    %c0_i32_0 = arith.constant 0 : i32
    %c0_i32_1 = arith.constant 0 : i32
    return %c0_i32, %c0_i32_0 : i32, i32
  }
  func.func @transform_3(%arg0: i32) -> (i32, i32) {
    %c0_i32 = arith.constant 0 : i32
    %c0_i32_0 = arith.constant 0 : i32
    %c0_i32_1 = arith.constant 0 : i32
    return %c0_i32, %c0_i32_0 : i32, i32
  }
  func.func @transform_4(%arg0: i32) -> (i32, i32) {
    %c0_i32 = arith.constant 0 : i32
    %c0_i32_0 = arith.constant 0 : i32
    %c0_i32_1 = arith.constant 0 : i32
    return %c0_i32, %c0_i32_0 : i32, i32
  }
  func.func @transform_5(%arg0: i32) -> (i32, i32) {
    %c0_i32 = arith.constant 0 : i32
    %c0_i32_0 = arith.constant 0 : i32
    %c0_i32_1 = arith.constant 0 : i32
    return %c0_i32, %c0_i32_0 : i32, i32
  }
  func.func @transform_6(%arg0: i32) -> (i32, i32) {
    %c0_i32 = arith.constant 0 : i32
    %c0_i32_0 = arith.constant 0 : i32
    %c0_i32_1 = arith.constant 0 : i32
    return %c0_i32, %c0_i32_0 : i32, i32
  }
  func.func @transform_7(%arg0: i32) -> (i32, i32) {
    %c0_i32 = arith.constant 0 : i32
    %c0_i32_0 = arith.constant 0 : i32
    %c0_i32_1 = arith.constant 0 : i32
    return %c0_i32, %c0_i32_0 : i32, i32
  }
  func.func @transform_8(%arg0: i32) -> (i32, i32, i32) {
    %c0_i32 = arith.constant 0 : i32
    %c0_i32_0 = arith.constant 0 : i32
    %c0_i32_1 = arith.constant 0 : i32
    return %arg0, %c0_i32, %c0_i32_0 : i32, i32, i32
  }
}

</mosaic_0001>

<llo_original>
// kernel: tpu_custom_call.1
$region0: #{tpu_custom_call.1}
  #allocation0 [shape = 'u32[]', space=smem, size = 0x4, offset = 0x4, fixed_abs, tag = 'smem constant byte address 0x4 - core index']
  #allocation1 [shape = 'u32[144,128]{1,0:T(1,128)}', space=vmem, size = 0x12000, scoped, tag = 'internal scratch']
  %s0 = inlined_call_operand.vmem [shape: f32[2,4,256], index: 0, kind: input, shape index: {}]
  %s1 = inlined_call_operand.vmem [shape: f32[9,256], index: 1, kind: input, shape index: {}]
  %s2 = inlined_call_operand.vmem [shape: f32[18,4], index: 2, kind: input, shape index: {}]
  %s3 = inlined_call_operand.vmem [shape: f32[2,1], index: 3, kind: input, shape index: {}]
  %s4 = inlined_call_operand.vmem [shape: f32[18,2], index: 4, kind: input, shape index: {}]
  %s5 = inlined_call_operand.vmem [shape: f32[2,1], index: 5, kind: input, shape index: {}]
  %s6 = inlined_call_operand.vmem [shape: f32[4,2], index: 6, kind: input, shape index: {}]
  %s7 = inlined_call_operand.vmem [shape: f32[4,1], index: 7, kind: input, shape index: {}]
  %s8 = inlined_call_operand.hbm [shape: f32[2,4,256], index: 8, kind: output, shape index: {}]
  %s9 = sld [smem:[#allocation0]]
  $region65: #{tpu_custom_call.1} parent=0
    _
  %s11 = ssub.s32 1, %s9
  %s12 = scalar_select 0, %s11, %s9
  $region1: #{tpu_custom_call.1} parent=0
    #allocation2 [shape = 'u8[8192]{0}', space=vmem, size = 0x2000, scoped, tag = 'output window, operand 0']
    #allocation3 [shape = 's32[2]{0}', space=sflag, size = 0x8, scoped, tag = 'scoped memory for tpu_custom_call.1']
    %13 = vsyncpa [#allocation3], 0
    %s14 = scalar_lea.sflag [#allocation3], 1
    %15 = vsyncpa %s14, 0
    loop: start=0, step=1, limit=4
    $region2: #{tpu_custom_call.1} parent=1 // loop_pre_header
      _
    $region3: #{tpu_custom_call.1} parent=1 // loop_header
      %s17 = sphi 0, %s21
      %p18 = scmp.ge.s32.totalorder %s17, 4
      %s27 = sphi 0, %s29
      %s30 = sphi 0, %s27
      %s31 = sphi 0, %s30
      %s47 = sphi 0, %s31
      %s51 = sphi 0, %s51
      %s53 = sphi 0, %s51
      %s54 = sphi 0, %s53
      %s68 = sphi 0, %s54
      %s72 = sphi 0, %s72
      %s74 = sphi 0, %s72
      %s75 = sphi 0, %s74
      %s89 = sphi 0, %s75
      %s93 = sphi 0, %s93
      %s95 = sphi 0, %s93
      %s96 = sphi 0, %s95
      %s110 = sphi 0, %s96
      %s114 = sphi 0, %s114
      %s116 = sphi 0, %s114
      %s117 = sphi 0, %s116
      %s131 = sphi 0, %s117
      %s135 = sphi 0, %s135
      %s137 = sphi 0, %s135
      %s138 = sphi 0, %s137
      %s152 = sphi 0, %s138
      %s156 = sphi 0, %s156
      %s158 = sphi 0, %s156
      %s159 = sphi 0, %s158
      %s173 = sphi 0, %s159
      %s177 = sphi 0, %s177
      %s179 = sphi 0, %s177
      %s180 = sphi 0, %s179
      %s194 = sphi 0, %s180
      %s200 = sphi 0, %s202
      %s203 = sphi 0, %s200
      %s204 = sphi 0, %s203
      %s220 = sphi 0, %s204
    $region4: #{tpu_custom_call.1} parent=1 // loop_header_branch
      %20 = sbr.rel (%p18) target = $region8
    $region5: #{tpu_custom_call.1} parent=1 // loop_body
      %s22 = ssub.s32 %s17, 1
      %s23 = ssub.s32 %s17, 2
      %s24 = sadd.s32 %s17, 1
      %s25 = ssub.s32 %s17, %s24
      %p26 = scmp.eq.s32.totalorder %s25, 0
      %s28 = sadd.s32 %s27, 1
      %s29 = scalar_select %p26, %s27, %s28
      %p32 = pneg %p26
      %p33 = scmp.eq.s32.totalorder %s17, 1
      %p34 = por %p32, %p33
      %p35 = scmp.ne.s32.totalorder %s27, %s30
      %p36 = scmp.eq.s32.totalorder %s17, 0
      %p37 = por %p35, %p36
      %p38 = scmp.ne.s32.totalorder %s27, %s30
      %p39 = scmp.eq.s32.totalorder %s22, 1
      %p40 = por %p38, %p39
      %p41 = scmp.ne.s32.totalorder %s30, %s31
      %p42 = scmp.eq.s32.totalorder %s22, 0
      %p43 = por %p41, %p42
      %p44 = scmp.ne.s32.totalorder %s30, %s31
      %p45 = scmp.eq.s32.totalorder %s23, 1
      %p46 = por %p44, %p45
      %p48 = scmp.ne.s32.totalorder %s31, %s47
      %p49 = scmp.eq.s32.totalorder %s23, 0
      %p50 = por %p48, %p49
      %s52 = sadd.s32 %s51, 1
      %p55 = scmp.eq.s32.totalorder %s17, 1
      %p56 = scmp.ne.s32.totalorder %s51, %s53
      %p57 = scmp.eq.s32.totalorder %s17, 0
      %p58 = por %p56, %p57
      %p59 = scmp.ne.s32.totalorder %s51, %s53
      %p60 = scmp.eq.s32.totalorder %s22, 1
      %p61 = por %p59, %p60
      %p62 = scmp.ne.s32.totalorder %s53, %s54
      %p63 = scmp.eq.s32.totalorder %s22, 0
      %p64 = por %p62, %p63
      %p65 = scmp.ne.s32.totalorder %s53, %s54
      %p66 = scmp.eq.s32.totalorder %s23, 1
      %p67 = por %p65, %p66
      %p69 = scmp.ne.s32.totalorder %s54, %s68
      %p70 = scmp.eq.s32.totalorder %s23, 0
      %p71 = por %p69, %p70
      %s73 = sadd.s32 %s72, 1
      %p76 = scmp.eq.s32.totalorder %s17, 1
      %p77 = scmp.ne.s32.totalorder %s72, %s74
      %p78 = scmp.eq.s32.totalorder %s17, 0
      %p79 = por %p77, %p78
      %p80 = scmp.ne.s32.totalorder %s72, %s74
      %p81 = scmp.eq.s32.totalorder %s22, 1
      %p82 = por %p80, %p81
      %p83 = scmp.ne.s32.totalorder %s74, %s75
      %p84 = scmp.eq.s32.totalorder %s22, 0
      %p85 = por %p83, %p84
      %p86 = scmp.ne.s32.totalorder %s74, %s75
      %p87 = scmp.eq.s32.totalorder %s23, 1
      %p88 = por %p86, %p87
      %p90 = scmp.ne.s32.totalorder %s75, %s89
      %p91 = scmp.eq.s32.totalorder %s23, 0
      %p92 = por %p90, %p91
      %s94 = sadd.s32 %s93, 1
      %p97 = scmp.eq.s32.totalorder %s17, 1
      %p98 = scmp.ne.s32.totalorder %s93, %s95
      %p99 = scmp.eq.s32.totalorder %s17, 0
      %p100 = por %p98, %p99
      %p101 = scmp.ne.s32.totalorder %s93, %s95
      %p102 = scmp.eq.s32.totalorder %s22, 1
      %p103 = por %p101, %p102
      %p104 = scmp.ne.s32.totalorder %s95, %s96
      %p105 = scmp.eq.s32.totalorder %s22, 0
      %p106 = por %p104, %p105
      %p107 = scmp.ne.s32.totalorder %s95, %s96
      %p108 = scmp.eq.s32.totalorder %s23, 1
      %p109 = por %p107, %p108
      %p111 = scmp.ne.s32.totalorder %s96, %s110
      %p112 = scmp.eq.s32.totalorder %s23, 0
      %p113 = por %p111, %p112
      %s115 = sadd.s32 %s114, 1
      %p118 = scmp.eq.s32.totalorder %s17, 1
      %p119 = scmp.ne.s32.totalorder %s114, %s116
      %p120 = scmp.eq.s32.totalorder %s17, 0
      %p121 = por %p119, %p120
      %p122 = scmp.ne.s32.totalorder %s114, %s116
      %p123 = scmp.eq.s32.totalorder %s22, 1
      %p124 = por %p122, %p123
      %p125 = scmp.ne.s32.totalorder %s116, %s117
      %p126 = scmp.eq.s32.totalorder %s22, 0
      %p127 = por %p125, %p126
      %p128 = scmp.ne.s32.totalorder %s116, %s117
      %p129 = scmp.eq.s32.totalorder %s23, 1
      %p130 = por %p128, %p129
      %p132 = scmp.ne.s32.totalorder %s117, %s131
      %p133 = scmp.eq.s32.totalorder %s23, 0
      %p134 = por %p132, %p133
      %s136 = sadd.s32 %s135, 1
      %p139 = scmp.eq.s32.totalorder %s17, 1
      %p140 = scmp.ne.s32.totalorder %s135, %s137
      %p141 = scmp.eq.s32.totalorder %s17, 0
      %p142 = por %p140, %p141
      %p143 = scmp.ne.s32.totalorder %s135, %s137
      %p144 = scmp.eq.s32.totalorder %s22, 1
      %p145 = por %p143, %p144
      %p146 = scmp.ne.s32.totalorder %s137, %s138
      %p147 = scmp.eq.s32.totalorder %s22, 0
      %p148 = por %p146, %p147
      %p149 = scmp.ne.s32.totalorder %s137, %s138
      %p150 = scmp.eq.s32.totalorder %s23, 1
      %p151 = por %p149, %p150
      %p153 = scmp.ne.s32.totalorder %s138, %s152
      %p154 = scmp.eq.s32.totalorder %s23, 0
      %p155 = por %p153, %p154
      %s157 = sadd.s32 %s156, 1
      %p160 = scmp.eq.s32.totalorder %s17, 1
      %p161 = scmp.ne.s32.totalorder %s156, %s158
      %p162 = scmp.eq.s32.totalorder %s17, 0
      %p163 = por %p161, %p162
      %p164 = scmp.ne.s32.totalorder %s156, %s158
      %p165 = scmp.eq.s32.totalorder %s22, 1
      %p166 = por %p164, %p165
      %p167 = scmp.ne.s32.totalorder %s158, %s159
      %p168 = scmp.eq.s32.totalorder %s22, 0
      %p169 = por %p167, %p168
      %p170 = scmp.ne.s32.totalorder %s158, %s159
      %p171 = scmp.eq.s32.totalorder %s23, 1
      %p172 = por %p170, %p171
      %p174 = scmp.ne.s32.totalorder %s159, %s173
      %p175 = scmp.eq.s32.totalorder %s23, 0
      %p176 = por %p174, %p175
      %s178 = sadd.s32 %s177, 1
      %p181 = scmp.eq.s32.totalorder %s17, 1
      %p182 = scmp.ne.s32.totalorder %s177, %s179
      %p183 = scmp.eq.s32.totalorder %s17, 0
      %p184 = por %p182, %p183
      %p185 = scmp.ne.s32.totalorder %s177, %s179
      %p186 = scmp.eq.s32.totalorder %s22, 1
      %p187 = por %p185, %p186
      %p188 = scmp.ne.s32.totalorder %s179, %s180
      %p189 = scmp.eq.s32.totalorder %s22, 0
      %p190 = por %p188, %p189
      %p191 = scmp.ne.s32.totalorder %s179, %s180
      %p192 = scmp.eq.s32.totalorder %s23, 1
      %p193 = por %p191, %p192
      %p195 = scmp.ne.s32.totalorder %s180, %s194
      %p196 = scmp.eq.s32.totalorder %s23, 0
      %p197 = por %p195, %p196
      %s198 = ssub.s32 %s17, %s24
      %p199 = scmp.eq.s32.totalorder %s198, 0
      %s201 = sadd.s32 %s200, 1
      %s202 = scalar_select %p199, %s200, %s201
      %p205 = pneg %p199
      %p206 = scmp.eq.s32.totalorder %s17, 1
      %p207 = por %p205, %p206
      %p208 = scmp.ne.s32.totalorder %s200, %s203
      %p209 = scmp.eq.s32.totalorder %s17, 0
      %p210 = por %p208, %p209
      %p211 = scmp.ne.s32.totalorder %s200, %s203
      %p212 = scmp.eq.s32.totalorder %s22, 1
      %p213 = por %p211, %p212
      %p214 = scmp.ne.s32.totalorder %s203, %s204
      %p215 = scmp.eq.s32.totalorder %s22, 0
      %p216 = por %p214, %p215
      %p217 = scmp.ne.s32.totalorder %s203, %s204
      %p218 = scmp.eq.s32.totalorder %s23, 1
      %p219 = por %p217, %p218
      %p221 = scmp.ne.s32.totalorder %s204, %s220
      %p222 = scmp.eq.s32.totalorder %s23, 0
      %p223 = por %p221, %p222
      %p224 = scmp.le.s32.totalorder 1, %s17
      %p225 = scmp.lt.s32.totalorder %s17, 3
      %p226 = pnand %p224, %p225
      %p227 = pneg %p226
      // Predicated region
      $region9: #{tpu_custom_call.1} parent=5 // pred_check
        _
      $region10: #{tpu_custom_call.1} parent=5 // pred_check_branch
        %229 = sbr.rel (%p226) target = $region12
      $region11: #{tpu_custom_call.1} parent=5 // pred_region
        %s230 = ssub.s32 %s17, 1
        // Predicated region
        $region13: #{tpu_custom_call.1} parent=11 // pred_check
          %p231 = pneg %p64
        $region14: #{tpu_custom_call.1} parent=11 // pred_check_branch
          %233 = sbr.rel (%p231) target = $region16
        $region15: #{tpu_custom_call.1} parent=11 // pred_region
          _
        $region16: #{tpu_custom_call.1} parent=11 // pred_fallthru
          _
        // Predicated region
        $region17: #{tpu_custom_call.1} parent=11 // pred_check
          %p234 = pneg %p85
        $region18: #{tpu_custom_call.1} parent=11 // pred_check_branch
          %236 = sbr.rel (%p234) target = $region20
        $region19: #{tpu_custom_call.1} parent=11 // pred_region
          _
        $region20: #{tpu_custom_call.1} parent=11 // pred_fallthru
          _
        // Predicated region
        $region21: #{tpu_custom_call.1} parent=11 // pred_check
          %p237 = pneg %p106
        $region22: #{tpu_custom_call.1} parent=11 // pred_check_branch
          %239 = sbr.rel (%p237) target = $region24
        $region23: #{tpu_custom_call.1} parent=11 // pred_region
          _
        $region24: #{tpu_custom_call.1} parent=11 // pred_fallthru
          _
        // Predicated region
        $region25: #{tpu_custom_call.1} parent=11 // pred_check
          %p240 = pneg %p127
        $region26: #{tpu_custom_call.1} parent=11 // pred_check_branch
          %242 = sbr.rel (%p240) target = $region28
        $region27: #{tpu_custom_call.1} parent=11 // pred_region
          _
        $region28: #{tpu_custom_call.1} parent=11 // pred_fallthru
          _
        // Predicated region
        $region29: #{tpu_custom_call.1} parent=11 // pred_check
          %p243 = pneg %p148
        $region30: #{tpu_custom_call.1} parent=11 // pred_check_branch
          %245 = sbr.rel (%p243) target = $region32
        $region31: #{tpu_custom_call.1} parent=11 // pred_region
          _
        $region32: #{tpu_custom_call.1} parent=11 // pred_fallthru
          _
        // Predicated region
        $region33: #{tpu_custom_call.1} parent=11 // pred_check
          %p246 = pneg %p169
        $region34: #{tpu_custom_call.1} parent=11 // pred_check_branch
          %248 = sbr.rel (%p246) target = $region36
        $region35: #{tpu_custom_call.1} parent=11 // pred_region
          _
        $region36: #{tpu_custom_call.1} parent=11 // pred_fallthru
          _
        // Predicated region
        $region37: #{tpu_custom_call.1} parent=11 // pred_check
          %p249 = pneg %p190
        $region38: #{tpu_custom_call.1} parent=11 // pred_check_branch
          %251 = sbr.rel (%p249) target = $region40
        $region39: #{tpu_custom_call.1} parent=11 // pred_region
          _
        $region40: #{tpu_custom_call.1} parent=11 // pred_fallthru
          _
      $region12: #{tpu_custom_call.1} parent=5 // pred_fallthru
        _
      %p252 = scmp.lt.s32.totalorder %s17, 2
      // Predicated region
      $region41: #{tpu_custom_call.1} parent=5 // pred_check
        %p253 = pneg %p252
      $region42: #{tpu_custom_call.1} parent=5 // pred_check_branch
        %255 = sbr.rel (%p253) target = $region44
      $region43: #{tpu_custom_call.1} parent=5 // pred_region
        // Predicated region
        $region45: #{tpu_custom_call.1} parent=43 // pred_check
          %p256 = pneg %p37
        $region46: #{tpu_custom_call.1} parent=43 // pred_check_branch
          %258 = sbr.rel (%p256) target = $region48
        $region47: #{tpu_custom_call.1} parent=43 // pred_region
          %p259 = scmp.lt.s32.totalorder %s17, 1
          %s260 = scalar_select %p259, %s17, 1
          %s261 = smul.addr %s260, 2
          %s262 = smul.addr %s261, 4
          %s263 = scalar_lea.vmem %s0, %s262
        $region48: #{tpu_custom_call.1} parent=43 // pred_fallthru
          _
      $region44: #{tpu_custom_call.1} parent=5 // pred_fallthru
        _
      %p264 = scmp.le.s32.totalorder 1, %s17
      %p265 = scmp.lt.s32.totalorder %s17, 3
      %p266 = pnand %p264, %p265
      %p267 = pneg %p266
      // Predicated region
      $region49: #{tpu_custom_call.1} parent=5 // pred_check
        _
      $region50: #{tpu_custom_call.1} parent=5 // pred_check_branch
        %269 = sbr.rel (%p266) target = $region52
      $region51: #{tpu_custom_call.1} parent=5 // pred_region
        %s270 = ssub.s32 %s17, 1
        %p271 = scmp.lt.s32.totalorder %s22, 1
        %s272 = scalar_select %p271, %s22, 1
        %s273 = smul.addr %s272, 2
        %s274 = smul.addr %s273, 4
        %s275 = scalar_lea.vmem %s0, %s274
        %p276 = pneg %p43
        %p277 = pneg %p40
        %p278 = pneg %p64
        %p279 = pneg %p61
        %p280 = pneg %p85
        %p281 = pneg %p82
        %p282 = pneg %p106
        %p283 = pneg %p103
        %p284 = pneg %p127
        %p285 = pneg %p124
        %p286 = pneg %p148
        %p287 = pneg %p145
        %p288 = pneg %p169
        %p289 = pneg %p166
        %p290 = pneg %p190
        %p291 = pneg %p187
        %p292 = pneg %p216
        %p293 = pneg %p213
        %s294 = sand.u32 %s203, 1
        %s295 = scalar_lea.sflag [#allocation3], %s294
        %s296 = sand.u32 %s203, 1
        %s297 = smul.addr %s296, 8
        %s298 = scalar_lea.vmem [#allocation2], %s297
        %p299 = scmp.lt.s32.totalorder %s22, 1
        %s300 = scalar_select %p299, %s22, 1
        %s301 = smul.addr %s300, 2
        %s302 = smul.addr %s301, 4
        %s303 = scalar_lea.vmem %s0, %s302
        %v304 = vld [vmem:[%s1] sm:$0xff]
        %v305 = vld [vmem:[%s1 + $0x8] sm:$0xff]
        %v306 = vld [vmem:[%s1 + $0x10] sm:$0x1]
        %v307 = vld [vmem:[%s1 + $0x18] sm:$0x1]
        %v308 = vld [vmem:[%s303] sm:$0xff]
        %v309 = vld [vmem:[%s2] sm:$0xff]
        %v310 = vld [vmem:[%s2 + $0x8] sm:$0xff]
        %v311 = vld [vmem:[%s2 + $0x10] sm:$0x3]
        %v313 = vcombine.high %v308, %v308
        %vm314 = vcmask 31744
        %v316 = vsel %vm314, %v309, 0
        %v319 = vsel %vm314, %v310, 0
        %v322 = vsel %vm314, %v311, 0
        %vm324 = vcmask 1043456
        %v325 = vsel %vm324, %v308, 0
        %v327 = vsel %vm324, %v313, 0
        %329 = vmatprep.subr.mxu0 %v327
        %330 = vmatpush1.msra.mxu0 %v325
        %331 = vmatprep.subr.mxu0 0.0
        %332 = vmatpush1.msra.mxu0 0.0
        %333 = vmatprep.subr.mxu0 0.0
        %334 = vmatpush1.msra.mxu0 0.0
        %335 = vmatprep.subr.mxu0 0.0
        %336 = vmatpush1.msra.mxu0 0.0
        %337 = vmatprep.subr.mxu0 0.0
        %338 = vmatpush1.msra.mxu0 0.0
        %339 = vmatprep.subr.mxu0 0.0
        %340 = vmatpush1.msra.mxu0 0.0
        %341 = vmatprep.subr.mxu0 0.0
        %342 = vmatpush1.msra.mxu0 0.0
        %343 = vmatprep.subr.mxu0 0.0
        %344 = vmatpush1.msra.mxu0 0.0
        %345 = vmatprep.subr.mxu0 0.0
        %346 = vmatpush1.msra.mxu0 0.0
        %347 = vmatprep.subr.mxu0 0.0
        %348 = vmatpush1.msra.mxu0 0.0
        %349 = vmatprep.subr.mxu0 0.0
        %350 = vmatpush1.msra.mxu0 0.0
        %351 = vmatprep.subr.mxu0 0.0
        %352 = vmatpush1.msra.mxu0 0.0
        %353 = vmatprep.subr.mxu0 0.0
        %354 = vmatpush1.msra.mxu0 0.0
        %355 = vmatprep.subr.mxu0 0.0
        %356 = vmatpush1.msra.mxu0 0.0
        %357 = vmatprep.subr.mxu0 0.0
        %358 = vmatpush1.msra.mxu0 0.0
        %359 = vmatprep.subr.mxu0 0.0
        %360 = vmatpush1.msra.mxu0 0.0
        %361 = vmatprep.subr.mxu0 0.0
        %362 = vmatpush1.msra.mxu0 0.0
        %363 = vmatprep.subr.mxu0 0.0
        %364 = vmatpush1.msra.mxu0 0.0
        %365 = vmatprep.subr.mxu0 0.0
        %366 = vmatpush1.msra.mxu0 0.0
        %367 = vmatprep.subr.mxu0 0.0
        %368 = vmatpush1.msra.mxu0 0.0
        %369 = vmatprep.subr.mxu0 0.0
        %370 = vmatpush1.msra.mxu0 0.0
        %371 = vmatprep.subr.mxu0 0.0
        %372 = vmatpush1.msra.mxu0 0.0
        %373 = vmatprep.subr.mxu0 0.0
        %374 = vmatpush1.msra.mxu0 0.0
        %375 = vmatprep.subr.mxu0 0.0
        %376 = vmatpush1.msra.mxu0 0.0
        %377 = vmatprep.subr.mxu0 0.0
        %378 = vmatpush1.msra.mxu0 0.0
        %379 = vmatprep.subr.mxu0 0.0
        %380 = vmatpush1.msra.mxu0 0.0
        %381 = vmatprep.subr.mxu0 0.0
        %382 = vmatpush1.msra.mxu0 0.0
        %383 = vmatprep.subr.mxu0 0.0
        %384 = vmatpush1.msra.mxu0 0.0
        %385 = vmatprep.subr.mxu0 0.0
        %386 = vmatpush1.msra.mxu0 0.0
        %387 = vmatprep.subr.mxu0 0.0
        %388 = vmatpush1.msra.mxu0 0.0
        %389 = vmatprep.subr.mxu0 0.0
        %390 = vmatpush1.msra.mxu0 0.0
        %391 = vmatprep.subr.mxu0 0.0
        %392 = vmatpush1.msra.mxu0 0.0
        %393 = vmatprep.mubr.f32.mxu0 0.0
        %394 = vmatmul.mubr.f32.gmra.mrb[0].mxu0 %v316
        %v395 = vpop.f32.mrb[0].mxu0
        %v396 = vadd.f32 0.0, %v395
        %v397 = vpop.f32.mrb[0].mxu0
        %v398 = vadd.f32 0.0, %v397
        %399 = vmatprep.mubr.f32.mxu0 0.0
        %400 = vmatmul.mubr.f32.gmra.mrb[0].mxu0 %v319
        %v401 = vpop.f32.mrb[0].mxu0
        %v402 = vadd.f32 0.0, %v401
        %v403 = vpop.f32.mrb[0].mxu0
        %v404 = vadd.f32 0.0, %v403
        %405 = vmatprep.mubr.f32.mxu0 0.0
        %406 = vmatmul.mubr.f32.gmra.mrb[0].mxu0 %v322
        %v407 = vpop.f32.mrb[0].mxu0
        %v408 = vadd.f32 0.0, %v407
        %v409 = vpop.f32.mrb[0].mxu0
        %v410 = vadd.f32 0.0, %v409
        %411 = vdwg.mxu0
        %412 = vrot.lane.b32.xlu0 %v396, 17
        %v413 = vpop.permute.xlu0 %412
        %414 = vrot.lane.b32.xlu0 %v398, 17
        %v415 = vpop.permute.xlu0 %414
        %v416 = vlaneseq
        %v417 = vand.u32 %v416, 127
        %vm418 = vcmp.lt.s32.totalorder %v417, 17
        %v419 = vsel %vm418, %v413, %v415
        %v420 = vsel %vm418, %v415, %v413
        %v421 = vlaneseq
        %v422 = vshrl.u32 %v421, 7
        %v423 = vsub.s32 0, %v422
        %v424 = vrot.slane %v304, %v423
        %v425 = vlaneseq
        %v426 = vshrl.u32 %v425, 7
        %v427 = vsub.s32 0, %v426
        %v428 = vrot.slane %v305, %v427
        %v429 = vmul.f32 %v420, %v424
        %v430 = vmul.f32 %v419, %v428
        %v431 = vadd.f32 %v429, 0.0
        %v432 = vadd.f32 %v430, 0.0
        %v435 = vrot.slane %v396, 2
        %v436 = vrot.slane %v398, 2
        %439 = vrot.lane.b32.xlu0 %v435, 16
        %v440 = vpop.permute.xlu0 %439
        %441 = vrot.lane.b32.xlu0 %v436, 16
        %v442 = vpop.permute.xlu0 %441
        %vm443 = vcmp.lt.s32.totalorder %v417, 16
        %v444 = vsel %vm443, %v440, %v442
        %v445 = vsel %vm443, %v442, %v440
        %v446 = vlaneseq
        %v447 = vshrl.u32 %v446, 7
        %v448 = vsub.s32 1, %v447
        %v449 = vrot.slane %v304, %v448
        %v450 = vlaneseq
        %v451 = vshrl.u32 %v450, 7
        %v452 = vsub.s32 1, %v451
        %v453 = vrot.slane %v305, %v452
        %v454 = vmul.f32 %v445, %v449
        %v455 = vmul.f32 %v444, %v453
        %v456 = vadd.f32 %v431, %v454
        %v457 = vadd.f32 %v432, %v455
        %v458 = vrot.slane %v396, 4
        %v459 = vrot.slane %v398, 4
        %462 = vrot.lane.b32.xlu0 %v458, 15
        %v463 = vpop.permute.xlu0 %462
        %464 = vrot.lane.b32.xlu0 %v459, 15
        %v465 = vpop.permute.xlu0 %464
        %vm466 = vcmp.lt.s32.totalorder %v417, 15
        %v467 = vsel %vm466, %v463, %v465
        %v468 = vsel %vm466, %v465, %v463
        %v469 = vlaneseq
        %v470 = vshrl.u32 %v469, 7
        %v471 = vsub.s32 2, %v470
        %v472 = vrot.slane %v304, %v471
        %v473 = vlaneseq
        %v474 = vshrl.u32 %v473, 7
        %v475 = vsub.s32 2, %v474
        %v476 = vrot.slane %v305, %v475
        %v477 = vmul.f32 %v468, %v472
        %v478 = vmul.f32 %v467, %v476
        %v479 = vadd.f32 %v456, %v477
        %v480 = vadd.f32 %v457, %v478
        %v481 = vrot.slane %v396, 6
        %v482 = vrot.slane %v398, 6
        %485 = vrot.lane.b32.xlu0 %v481, 1
        %v486 = vpop.permute.xlu0 %485
        %487 = vrot.lane.b32.xlu0 %v482, 1
        %v488 = vpop.permute.xlu0 %487
        %vm489 = vcmp.lt.s32.totalorder %v417, 1
        %v490 = vsel %vm489, %v486, %v488
        %v491 = vsel %vm489, %v488, %v486
        %v492 = vlaneseq
        %v493 = vshrl.u32 %v492, 7
        %v494 = vsub.s32 3, %v493
        %v495 = vrot.slane %v304, %v494
        %v496 = vlaneseq
        %v497 = vshrl.u32 %v496, 7
        %v498 = vsub.s32 3, %v497
        %v499 = vrot.slane %v305, %v498
        %v500 = vmul.f32 %v491, %v495
        %v501 = vmul.f32 %v490, %v499
        %v502 = vadd.f32 %v479, %v500
        %v503 = vadd.f32 %v480, %v501
        %v504 = vadd.f32 %v502, %v402
        %v505 = vadd.f32 %v503, %v404
        %v508 = vrot.slane %v402, 2
        %v509 = vrot.slane %v404, 2
        %512 = vrot.lane.b32.xlu0 %v508, 127
        %v513 = vpop.permute.xlu0 %512
        %514 = vrot.lane.b32.xlu0 %v509, 127
        %v515 = vpop.permute.xlu0 %514
        %vm516 = vcmp.lt.s32.totalorder %v417, 127
        %v517 = vsel %vm516, %v513, %v515
        %v518 = vsel %vm516, %v515, %v513
        %v519 = vlaneseq
        %v520 = vshrl.u32 %v519, 7
        %v521 = vsub.s32 5, %v520
        %v522 = vrot.slane %v304, %v521
        %v523 = vlaneseq
        %v524 = vshrl.u32 %v523, 7
        %v525 = vsub.s32 5, %v524
        %v526 = vrot.slane %v305, %v525
        %v527 = vmul.f32 %v517, %v522
        %v528 = vmul.f32 %v518, %v526
        %v529 = vadd.f32 %v504, %v527
        %v530 = vadd.f32 %v505, %v528
        %v531 = vrot.slane %v402, 4
        %v532 = vrot.slane %v404, 4
        %535 = vrot.lane.b32.xlu0 %v531, 113
        %v536 = vpop.permute.xlu0 %535
        %537 = vrot.lane.b32.xlu0 %v532, 113
        %v538 = vpop.permute.xlu0 %537
        %vm539 = vcmp.lt.s32.totalorder %v417, 113
        %v540 = vsel %vm539, %v536, %v538
        %v541 = vsel %vm539, %v538, %v536
        %v542 = vlaneseq
        %v543 = vshrl.u32 %v542, 7
        %v544 = vsub.s32 6, %v543
        %v545 = vrot.slane %v304, %v544
        %v546 = vlaneseq
        %v547 = vshrl.u32 %v546, 7
        %v548 = vsub.s32 6, %v547
        %v549 = vrot.slane %v305, %v548
        %v550 = vmul.f32 %v540, %v545
        %v551 = vmul.f32 %v541, %v549
        %v552 = vadd.f32 %v529, %v550
        %v553 = vadd.f32 %v530, %v551
        %v554 = vrot.slane %v402, 6
        %v555 = vrot.slane %v404, 6
        %558 = vrot.lane.b32.xlu0 %v554, 112
        %v559 = vpop.permute.xlu0 %558
        %560 = vrot.lane.b32.xlu0 %v555, 112
        %v561 = vpop.permute.xlu0 %560
        %vm562 = vcmp.lt.s32.totalorder %v417, 112
        %v563 = vsel %vm562, %v559, %v561
        %v564 = vsel %vm562, %v561, %v559
        %v565 = vlaneseq
        %v566 = vshrl.u32 %v565, 7
        %v567 = vsub.s32 7, %v566
        %v568 = vrot.slane %v304, %v567
        %v569 = vlaneseq
        %v570 = vshrl.u32 %v569, 7
        %v571 = vsub.s32 7, %v570
        %v572 = vrot.slane %v305, %v571
        %v573 = vmul.f32 %v563, %v568
        %v574 = vmul.f32 %v564, %v572
        %v575 = vadd.f32 %v552, %v573
        %v576 = vadd.f32 %v553, %v574
        %577 = vrot.lane.b32.xlu0 %v408, 111
        %v578 = vpop.permute.xlu0 %577
        %579 = vrot.lane.b32.xlu0 %v410, 111
        %v580 = vpop.permute.xlu0 %579
        %vm581 = vcmp.lt.s32.totalorder %v417, 111
        %v582 = vsel %vm581, %v578, %v580
        %v583 = vsel %vm581, %v580, %v578
        %v584 = vlaneseq
        %v585 = vshrl.u32 %v584, 7
        %v586 = vsub.s32 0, %v585
        %v587 = vrot.slane %v306, %v586
        %v588 = vlaneseq
        %v589 = vshrl.u32 %v588, 7
        %v590 = vsub.s32 0, %v589
        %v591 = vrot.slane %v307, %v590
        %v592 = vmul.f32 %v582, %v587
        %v593 = vmul.f32 %v583, %v591
        %v594 = vadd.f32 %v575, %v592
        %v595 = vadd.f32 %v576, %v593
        %v596 = vld [vmem:[%s3] sm:$0x3]
        %598 = vset.pattern.permute.xlu0 0
        %599 = vperm.xlu0 %598, %v596
        %v600 = vpop.permute.xlu0 %599
        %v602 = vadd.f32 %v594, %v600
        %v603 = vadd.f32 %v595, %v600
        %v604 = vmax.f32 %v602, 0.0
        %v605 = vmax.f32 %v603, 0.0
        %v606 = vld [vmem:[%s4] sm:$0xff]
        %v607 = vld [vmem:[%s4 + $0x8] sm:$0xff]
        %v608 = vld [vmem:[%s4 + $0x10] sm:$0x3]
        %vm609 = vcmask 15360
        %v611 = vsel %vm609, %v606, 0
        %v614 = vsel %vm609, %v607, 0
        %v617 = vsel %vm609, %v608, 0
        %vm619 = vcmask 1041408
        %v621 = vsel %vm619, %v604, 0
        %v624 = vsel %vm619, %v605, 0
        %626 = vmatprep.subr.mxu0 %v624
        %627 = vmatpush1.msra.mxu0 %v621
        %628 = vmatprep.subr.mxu0 0.0
        %629 = vmatpush1.msra.mxu0 0.0
        %630 = vmatprep.subr.mxu0 0.0
        %631 = vmatpush1.msra.mxu0 0.0
        %632 = vmatprep.subr.mxu0 0.0
        %633 = vmatpush1.msra.mxu0 0.0
        %634 = vmatprep.subr.mxu0 0.0
        %635 = vmatpush1.msra.mxu0 0.0
        %636 = vmatprep.subr.mxu0 0.0
        %637 = vmatpush1.msra.mxu0 0.0
        %638 = vmatprep.subr.mxu0 0.0
        %639 = vmatpush1.msra.mxu0 0.0
        %640 = vmatprep.subr.mxu0 0.0
        %641 = vmatpush1.msra.mxu0 0.0
        %642 = vmatprep.subr.mxu0 0.0
        %643 = vmatpush1.msra.mxu0 0.0
        %644 = vmatprep.subr.mxu0 0.0
        %645 = vmatpush1.msra.mxu0 0.0
        %646 = vmatprep.subr.mxu0 0.0
        %647 = vmatpush1.msra.mxu0 0.0
        %648 = vmatprep.subr.mxu0 0.0
        %649 = vmatpush1.msra.mxu0 0.0
        %650 = vmatprep.subr.mxu0 0.0
        %651 = vmatpush1.msra.mxu0 0.0
        %652 = vmatprep.subr.mxu0 0.0
        %653 = vmatpush1.msra.mxu0 0.0
        %654 = vmatprep.subr.mxu0 0.0
        %655 = vmatpush1.msra.mxu0 0.0
        %656 = vmatprep.subr.mxu0 0.0
        %657 = vmatpush1.msra.mxu0 0.0
        %658 = vmatprep.subr.mxu0 0.0
        %659 = vmatpush1.msra.mxu0 0.0
        %660 = vmatprep.subr.mxu0 0.0
        %661 = vmatpush1.msra.mxu0 0.0
        %662 = vmatprep.subr.mxu0 0.0
        %663 = vmatpush1.msra.mxu0 0.0
        %664 = vmatprep.subr.mxu0 0.0
        %665 = vmatpush1.msra.mxu0 0.0
        %666 = vmatprep.subr.mxu0 0.0
        %667 = vmatpush1.msra.mxu0 0.0
        %668 = vmatprep.subr.mxu0 0.0
        %669 = vmatpush1.msra.mxu0 0.0
        %670 = vmatprep.subr.mxu0 0.0
        %671 = vmatpush1.msra.mxu0 0.0
        %672 = vmatprep.subr.mxu0 0.0
        %673 = vmatpush1.msra.mxu0 0.0
        %674 = vmatprep.subr.mxu0 0.0
        %675 = vmatpush1.msra.mxu0 0.0
        %676 = vmatprep.subr.mxu0 0.0
        %677 = vmatpush1.msra.mxu0 0.0
        %678 = vmatprep.subr.mxu0 0.0
        %679 = vmatpush1.msra.mxu0 0.0
        %680 = vmatprep.subr.mxu0 0.0
        %681 = vmatpush1.msra.mxu0 0.0
        %682 = vmatprep.subr.mxu0 0.0
        %683 = vmatpush1.msra.mxu0 0.0
        %684 = vmatprep.subr.mxu0 0.0
        %685 = vmatpush1.msra.mxu0 0.0
        %686 = vmatprep.subr.mxu0 0.0
        %687 = vmatpush1.msra.mxu0 0.0
        %688 = vmatprep.subr.mxu0 0.0
        %689 = vmatpush1.msra.mxu0 0.0
        %690 = vmatprep.mubr.f32.mxu0 0.0
        %691 = vmatmul.mubr.f32.gmra.mrb[0].mxu0 %v611
        %v692 = vpop.f32.mrb[0].mxu0
        %v693 = vadd.f32 0.0, %v692
        %v694 = vpop.f32.mrb[0].mxu0
        %v695 = vadd.f32 0.0, %v694
        %696 = vmatprep.mubr.f32.mxu0 0.0
        %697 = vmatmul.mubr.f32.gmra.mrb[0].mxu0 %v614
        %v698 = vpop.f32.mrb[0].mxu0
        %v699 = vadd.f32 0.0, %v698
        %v700 = vpop.f32.mrb[0].mxu0
        %v701 = vadd.f32 0.0, %v700
        %702 = vmatprep.mubr.f32.mxu0 0.0
        %703 = vmatmul.mubr.f32.gmra.mrb[0].mxu0 %v617
        %v704 = vpop.f32.mrb[0].mxu0
        %v705 = vadd.f32 0.0, %v704
        %v706 = vpop.f32.mrb[0].mxu0
        %v707 = vadd.f32 0.0, %v706
        %708 = vdwg.mxu0
        %709 = vrot.lane.b32.xlu0 %v693, 17
        %v710 = vpop.permute.xlu0 %709
        %711 = vrot.lane.b32.xlu0 %v695, 17
        %v712 = vpop.permute.xlu0 %711
        %v713 = vsel %vm418, %v710, %v712
        %v714 = vsel %vm418, %v712, %v710
        %v715 = vmul.f32 %v714, %v424
        %v716 = vmul.f32 %v713, %v428
        %v717 = vadd.f32 %v715, 0.0
        %v718 = vadd.f32 %v716, 0.0
        %v721 = vrot.slane %v693, 2
        %v722 = vrot.slane %v695, 2
        %725 = vrot.lane.b32.xlu0 %v721, 16
        %v726 = vpop.permute.xlu0 %725
        %727 = vrot.lane.b32.xlu0 %v722, 16
        %v728 = vpop.permute.xlu0 %727
        %v729 = vsel %vm443, %v726, %v728
        %v730 = vsel %vm443, %v728, %v726
        %v731 = vmul.f32 %v730, %v449
        %v732 = vmul.f32 %v729, %v453
        %v733 = vadd.f32 %v717, %v731
        %v734 = vadd.f32 %v718, %v732
        %v735 = vrot.slane %v693, 4
        %v736 = vrot.slane %v695, 4
        %739 = vrot.lane.b32.xlu0 %v735, 15
        %v740 = vpop.permute.xlu0 %739
        %741 = vrot.lane.b32.xlu0 %v736, 15
        %v742 = vpop.permute.xlu0 %741
        %v743 = vsel %vm466, %v740, %v742
        %v744 = vsel %vm466, %v742, %v740
        %v745 = vmul.f32 %v744, %v472
        %v746 = vmul.f32 %v743, %v476
        %v747 = vadd.f32 %v733, %v745
        %v748 = vadd.f32 %v734, %v746
        %v749 = vrot.slane %v693, 6
        %v750 = vrot.slane %v695, 6
        %753 = vrot.lane.b32.xlu0 %v749, 1
        %v754 = vpop.permute.xlu0 %753
        %755 = vrot.lane.b32.xlu0 %v750, 1
        %v756 = vpop.permute.xlu0 %755
        %v757 = vsel %vm489, %v754, %v756
        %v758 = vsel %vm489, %v756, %v754
        %v759 = vmul.f32 %v758, %v495
        %v760 = vmul.f32 %v757, %v499
        %v761 = vadd.f32 %v747, %v759
        %v762 = vadd.f32 %v748, %v760
        %v763 = vadd.f32 %v761, %v699
        %v764 = vadd.f32 %v762, %v701
        %v767 = vrot.slane %v699, 2
        %v768 = vrot.slane %v701, 2
        %771 = vrot.lane.b32.xlu0 %v767, 127
        %v772 = vpop.permute.xlu0 %771
        %773 = vrot.lane.b32.xlu0 %v768, 127
        %v774 = vpop.permute.xlu0 %773
        %v775 = vsel %vm516, %v772, %v774
        %v776 = vsel %vm516, %v774, %v772
        %v777 = vmul.f32 %v775, %v522
        %v778 = vmul.f32 %v776, %v526
        %v779 = vadd.f32 %v763, %v777
        %v780 = vadd.f32 %v764, %v778
        %v781 = vrot.slane %v699, 4
        %v782 = vrot.slane %v701, 4
        %785 = vrot.lane.b32.xlu0 %v781, 113
        %v786 = vpop.permute.xlu0 %785
        %787 = vrot.lane.b32.xlu0 %v782, 113
        %v788 = vpop.permute.xlu0 %787
        %v789 = vsel %vm539, %v786, %v788
        %v790 = vsel %vm539, %v788, %v786
        %v791 = vmul.f32 %v789, %v545
        %v792 = vmul.f32 %v790, %v549
        %v793 = vadd.f32 %v779, %v791
        %v794 = vadd.f32 %v780, %v792
        %v795 = vrot.slane %v699, 6
        %v796 = vrot.slane %v701, 6
        %799 = vrot.lane.b32.xlu0 %v795, 112
        %v800 = vpop.permute.xlu0 %799
        %801 = vrot.lane.b32.xlu0 %v796, 112
        %v802 = vpop.permute.xlu0 %801
        %v803 = vsel %vm562, %v800, %v802
        %v804 = vsel %vm562, %v802, %v800
        %v805 = vmul.f32 %v803, %v568
        %v806 = vmul.f32 %v804, %v572
        %v807 = vadd.f32 %v793, %v805
        %v808 = vadd.f32 %v794, %v806
        %809 = vrot.lane.b32.xlu0 %v705, 111
        %v810 = vpop.permute.xlu0 %809
        %811 = vrot.lane.b32.xlu0 %v707, 111
        %v812 = vpop.permute.xlu0 %811
        %v813 = vsel %vm581, %v810, %v812
        %v814 = vsel %vm581, %v812, %v810
        %v815 = vmul.f32 %v813, %v587
        %v816 = vmul.f32 %v814, %v591
        %v817 = vadd.f32 %v807, %v815
        %v818 = vadd.f32 %v808, %v816
        %v819 = vld [vmem:[%s5] sm:$0x3]
        %821 = vset.pattern.permute.xlu0 0
        %822 = vperm.xlu0 %821, %v819
        %v823 = vpop.permute.xlu0 %822
        %v825 = vadd.f32 %v817, %v823
        %v826 = vadd.f32 %v818, %v823
        %v827 = vmax.f32 %v825, 0.0
        %v828 = vmax.f32 %v826, 0.0
        %v829 = vld [vmem:[%s6] sm:$0xf]
        %v830 = vld [vmem:[%s7] sm:$0xf]
        %832 = vset.pattern.permute.xlu0 0
        %833 = vperm.xlu0 %832, %v830
        %v834 = vpop.permute.xlu0 %833
        %v837 = vsel %vm609, %v829, 0
        %v840 = vsel %vm619, %v827, 0
        %v843 = vsel %vm619, %v828, 0
        %845 = vmatprep.subr.mxu0 %v843
        %846 = vmatpush1.msra.mxu0 %v840
        %847 = vmatprep.subr.mxu0 0.0
        %848 = vmatpush1.msra.mxu0 0.0
        %849 = vmatprep.subr.mxu0 0.0
        %850 = vmatpush1.msra.mxu0 0.0
        %851 = vmatprep.subr.mxu0 0.0
        %852 = vmatpush1.msra.mxu0 0.0
        %853 = vmatprep.subr.mxu0 0.0
        %854 = vmatpush1.msra.mxu0 0.0
        %855 = vmatprep.subr.mxu0 0.0
        %856 = vmatpush1.msra.mxu0 0.0
        %857 = vmatprep.subr.mxu0 0.0
        %858 = vmatpush1.msra.mxu0 0.0
        %859 = vmatprep.subr.mxu0 0.0
        %860 = vmatpush1.msra.mxu0 0.0
        %861 = vmatprep.subr.mxu0 0.0
        %862 = vmatpush1.msra.mxu0 0.0
        %863 = vmatprep.subr.mxu0 0.0
        %864 = vmatpush1.msra.mxu0 0.0
        %865 = vmatprep.subr.mxu0 0.0
        %866 = vmatpush1.msra.mxu0 0.0
        %867 = vmatprep.subr.mxu0 0.0
        %868 = vmatpush1.msra.mxu0 0.0
        %869 = vmatprep.subr.mxu0 0.0
        %870 = vmatpush1.msra.mxu0 0.0
        %871 = vmatprep.subr.mxu0 0.0
        %872 = vmatpush1.msra.mxu0 0.0
        %873 = vmatprep.subr.mxu0 0.0
        %874 = vmatpush1.msra.mxu0 0.0
        %875 = vmatprep.subr.mxu0 0.0
        %876 = vmatpush1.msra.mxu0 0.0
        %877 = vmatprep.subr.mxu0 0.0
        %878 = vmatpush1.msra.mxu0 0.0
        %879 = vmatprep.subr.mxu0 0.0
        %880 = vmatpush1.msra.mxu0 0.0
        %881 = vmatprep.subr.mxu0 0.0
        %882 = vmatpush1.msra.mxu0 0.0
        %883 = vmatprep.subr.mxu0 0.0
        %884 = vmatpush1.msra.mxu0 0.0
        %885 = vmatprep.subr.mxu0 0.0
        %886 = vmatpush1.msra.mxu0 0.0
        %887 = vmatprep.subr.mxu0 0.0
        %888 = vmatpush1.msra.mxu0 0.0
        %889 = vmatprep.subr.mxu0 0.0
        %890 = vmatpush1.msra.mxu0 0.0
        %891 = vmatprep.subr.mxu0 0.0
        %892 = vmatpush1.msra.mxu0 0.0
        %893 = vmatprep.subr.mxu0 0.0
        %894 = vmatpush1.msra.mxu0 0.0
        %895 = vmatprep.subr.mxu0 0.0
        %896 = vmatpush1.msra.mxu0 0.0
        %897 = vmatprep.subr.mxu0 0.0
        %898 = vmatpush1.msra.mxu0 0.0
        %899 = vmatprep.subr.mxu0 0.0
        %900 = vmatpush1.msra.mxu0 0.0
        %901 = vmatprep.subr.mxu0 0.0
        %902 = vmatpush1.msra.mxu0 0.0
        %903 = vmatprep.subr.mxu0 0.0
        %904 = vmatpush1.msra.mxu0 0.0
        %905 = vmatprep.subr.mxu0 0.0
        %906 = vmatpush1.msra.mxu0 0.0
        %907 = vmatprep.subr.mxu0 0.0
        %908 = vmatpush1.msra.mxu0 0.0
        %909 = vmatprep.mubr.f32.mxu0 0.0
        %910 = vmatmul.mubr.f32.gmra.mrb[0].mxu0 %v837
        %v911 = vpop.f32.mrb[0].mxu0
        %v912 = vadd.f32 %v834, %v911
        %v913 = vpop.f32.mrb[0].mxu0
        %v914 = vadd.f32 %v834, %v913
        %915 = vdwg.mxu0
        %v916 = vxor.u32 %v912, 2147483648
        %v917 = vxor.u32 %v914, 2147483648
        %v918 = vmul.f32 %v916, 1.442695
        %v919 = vpow.pop %v918
        %v920 = vmul.f32 %v917, 1.442695
        %v921 = vpow.pop %v920
        %v922 = vadd.f32 %v919, 1.0
        %v923 = vadd.f32 %v921, 1.0
        %v924 = vrcp.pop %v922
        %v925 = vmul.f32 1.0, %v924
        %v926 = vrcp.pop %v923
        %v927 = vmul.f32 1.0, %v926
        %v930 = vcombine.low %v925, %v927
        %932 = vst [vmem:[%s298] sm:$0xff] %v930
        %s933 = sand.u32 %s203, 1
        %s934 = scalar_lea.sflag [#allocation3], %s933
        %s935 = sand.u32 %s203, 1
        %s936 = smul.addr %s935, 8
        %s937 = scalar_lea.vmem [#allocation2], %s936
        // Predicated region
        $region53: #{tpu_custom_call.1} parent=51 // pred_check
          %p938 = pneg %p213
        $region54: #{tpu_custom_call.1} parent=51 // pred_check_branch
          %940 = sbr.rel (%p938) target = $region56
        $region55: #{tpu_custom_call.1} parent=51 // pred_region
          %s942 = ssub.s32 128, 128
          %943 = vsyncadd %s934, %s942
          %s944 = smul.addr %s22, 2
          %s945 = smul.addr %s944, 64
          %s946 = scalar_lea.hbm %s8, %s945
          %s948 = sshll.u32 %s937, 4
          %s949 = int_to_ptr.vmem [resolvable:$true] %s948
          %951 = dma.vmem_to_hbm [thread:$0]  %s949, 128, %s946, %s934
        $region56: #{tpu_custom_call.1} parent=51 // pred_fallthru
          _
      $region52: #{tpu_custom_call.1} parent=5 // pred_fallthru
        _
      %p952 = scmp.le.s32.totalorder 2, %s17
      // Predicated region
      $region57: #{tpu_custom_call.1} parent=5 // pred_check
        %p953 = pneg %p952
      $region58: #{tpu_custom_call.1} parent=5 // pred_check_branch
        %955 = sbr.rel (%p953) target = $region60
      $region59: #{tpu_custom_call.1} parent=5 // pred_region
        %s956 = ssub.s32 %s17, 2
        // Predicated region
        $region61: #{tpu_custom_call.1} parent=59 // pred_check
          %p957 = pneg %p219
        $region62: #{tpu_custom_call.1} parent=59 // pred_check_branch
          %959 = sbr.rel (%p957) target = $region64
        $region63: #{tpu_custom_call.1} parent=59 // pred_region
          %s960 = sand.u32 %s204, 1
          %s961 = scalar_lea.sflag [#allocation3], %s960
          %s962 = sand.u32 %s204, 1
          %s963 = smul.addr %s962, 8
          %s964 = scalar_lea.vmem [#allocation2], %s963
          %965 = dma.done %s961, 128
        $region64: #{tpu_custom_call.1} parent=59 // pred_fallthru
          _
      $region60: #{tpu_custom_call.1} parent=5 // pred_fallthru
        _
    $region6: #{tpu_custom_call.1} parent=1 // loop_footer
      %s21 = sadd.s32 1, %s17
    $region7: #{tpu_custom_call.1} parent=1 // loop_footer_branch
      %16 = sbr.rel target = $region3
    $region8: #{tpu_custom_call.1} parent=1 // loop_exit
      _
    %966 = vsyncpa [#allocation3], 1
    %s967 = scalar_lea.sflag [#allocation3], 1
    %968 = vsyncpa %s967, 1

</llo_original>
